<compile_context>
chip_gen: v5e
topology: v5e:2x2
jax: 0.10.0
libtpu: 0.0.40
codegen_flags: <defaults>
</compile_context>

<pallas_src>
import jax
import jax.numpy as jnp
from jax.experimental import pallas as pl
from jax.experimental.pallas import tpu as pltpu


def _sqrelu_kernel(x_ref, o_ref):
    # Elementwise relu(x)^2 in the input dtype (matches torch.pow(relu(x), 2)).
    x = x_ref[...]
    r = jnp.maximum(x, jnp.zeros((), x.dtype))
    o_ref[...] = r * r


def _choose_tile_rows(rows, lane_w, itemsize):
    """Dtype-aware, VMEM-budgeted row-tile size that avoids ragged blocks."""
    # sublane packing: 8 rows/vreg for 4-byte, 16 for 2-byte, 32 for 1-byte
    packing = (4 // itemsize) * 8
    # ~4 MiB per tile buffer -> (in + out) x double-buffering ~= 16 MiB,
    # comfortably under the 32 MiB scoped VMEM limit we request (v7x-safe).
    budget_bytes = 4 * 1024 * 1024
    max_rows = max(packing, budget_bytes // (lane_w * itemsize))

    if rows <= max_rows:
        # Single tile covering the full row extent (block == full dim is always
        # legal, even if not a multiple of the sublane packing).
        return rows

    max_aligned = max(packing, (max_rows // packing) * packing)
    # Prefer a packing-aligned tile size that divides rows exactly so the last
    # grid step is not a ragged/masked partial block.
    cand = max_aligned
    while cand >= packing:
        if rows % cand == 0:
            return cand
        cand -= packing
    return max_aligned


def squared_relu(x):
    """relu(x)**2 over an arbitrarily-shaped array."""
    orig_shape = x.shape
    total = int(x.size)
    if total == 0:
        return x

    flat = x.reshape(total)

    # Largest lane width (multiple of 128) dividing the element count so no
    # padding copy is needed on the common path.
    lane_w = None
    for cand in (1024, 512, 256, 128):
        if total % cand == 0:
            lane_w = cand
            break

    pad = 0
    if lane_w is None:
        # Rare fallback (element count has no multiple-of-128 factor): pad the
        # flat view to a lane-dense width. Extra HBM copy only on this path.
        lane_w = 128
        pad = (-total) % lane_w
        flat = jnp.pad(flat, (0, pad))

    rows = (total + pad) // lane_w
    x2 = flat.reshape(rows, lane_w)

    itemsize = jnp.dtype(x.dtype).itemsize
    tile_rows = _choose_tile_rows(rows, lane_w, itemsize)
    grid = (pl.cdiv(rows, tile_rows),)

    n_bytes = rows * lane_w * itemsize
    out = pl.pallas_call(
        _sqrelu_kernel,
        out_shape=jax.ShapeDtypeStruct((rows, lane_w), x.dtype),
        grid_spec=pltpu.PrefetchScalarGridSpec(
            num_scalar_prefetch=0,
            grid=grid,
            in_specs=[pl.BlockSpec((tile_rows, lane_w), lambda i: (i, 0))],
            out_specs=pl.BlockSpec((tile_rows, lane_w), lambda i: (i, 0)),
        ),
        compiler_params=pltpu.CompilerParams(
            dimension_semantics=("parallel",),
            vmem_limit_bytes=32 * 1024 * 1024,
        ),
        cost_estimate=pl.CostEstimate(
            flops=2 * rows * lane_w,        # max + mul per element
            transcendentals=0,
            bytes_accessed=2 * n_bytes,     # read + write, strictly mem-bound
        ),
    )(x2)

    out = out.reshape(-1)
    if pad:
        out = out[:total]
    return out.reshape(orig_shape)


def squared_relu_ref(x):
    """Pure-JAX reference (matches torch.pow(torch.relu(x), 2))."""
    return jnp.square(jnp.maximum(x, 0))


if __name__ == "__main__":
    key = jax.random.PRNGKey(0)

    # Primary test: typical activation tensor shape.
    x = jax.random.normal(key, (2, 4, 16, 16), dtype=jnp.float32)
    out = jax.block_until_ready(squared_relu(x))
    ref = squared_relu_ref(x)
    assert out.shape == x.shape
    assert jnp.allclose(out, ref, atol=0.0, rtol=0.0)

    k1, k2, k3, k4 = jax.random.split(key, 4)

    # rows not an exact multiple of the default tile (exercises divisor search
    # / single-tile path), f32.
    x_rag = jax.random.normal(k1, (4, 300, 128), dtype=jnp.float32)
    out_rag = jax.block_until_ready(squared_relu(x_rag))
    assert jnp.allclose(out_rag, squared_relu_ref(x_rag))

    # bf16 path (16-row sublane packing).
    x_bf = jax.random.normal(k2, (2, 8, 32), dtype=jnp.bfloat16)
    out_bf = jax.block_until_ready(squared_relu(x_bf))
    assert jnp.allclose(out_bf.astype(jnp.float32),
                        squared_relu_ref(x_bf).astype(jnp.float32))

    # Odd element count (pad fallback path).
    x_odd = jax.random.normal(k3, (3, 5, 7), dtype=jnp.float32)
    out_odd = jax.block_until_ready(squared_relu(x_odd))
    assert jnp.allclose(out_odd, squared_relu_ref(x_odd))

    # Multi-tile path (forces grid > 1 with an exact-divisor tile size).
    x_big = jax.random.normal(k4, (4096, 1280), dtype=jnp.float32)
    out_big = jax.block_until_ready(squared_relu(x_big))
    assert jnp.allclose(out_big, squared_relu_ref(x_big))

    print("KERNEL_OK")
</pallas_src>

<mosaic_0001>
module attributes {stable_mosaic.version = 11 : i64} {
  func.func @_sqrelu_kernel(%arg0: i32, %arg1: memref<2x1024xf32, #tpu.memory_space<vmem>>, %arg2: memref<2x1024xf32, #tpu.memory_space<vmem>>) attributes {dimension_semantics = [#tpu.dimension_semantics<parallel>], iteration_bounds = array<i64: 1>, scalar_prefetch = 0 : i64, scratch_operands = 0 : i64, tpu.core_type = #tpu.core_type<tc>, window_params = [{transform_indices = @transform_0, window_bounds = array<i64: 2, 1024>}, {transform_indices = @transform_1, window_bounds = array<i64: 2, 1024>}]} {
    %c0 = arith.constant 0 : index
    %c0_0 = arith.constant 0 : index
    %0 = vector.load %arg1[%c0, %c0_0] : memref<2x1024xf32, #tpu.memory_space<vmem>>, vector<2x1024xf32>
    %cst = arith.constant 0.000000e+00 : f32
    %1 = vector.broadcast %cst : f32 to vector<2x1024xf32>
    %2 = arith.maximumf %0, %1 : vector<2x1024xf32>
    %3 = arith.mulf %2, %2 : vector<2x1024xf32>
    %c0_1 = arith.constant 0 : index
    %c0_2 = arith.constant 0 : index
    %4 = vector.load %arg2[%c0_1, %c0_2] : memref<2x1024xf32, #tpu.memory_space<vmem>>, vector<2x1024xf32>
    tpu.vector_store %arg2[%c0_1, %c0_2], %3 {strides = array<i32>} : memref<2x1024xf32, #tpu.memory_space<vmem>>, vector<2x1024xf32>,
    return
  }
  func.func @transform_0(%arg0: i32) -> (i32, i32) {
    %c0_i32 = arith.constant 0 : i32
    %c0_i32_0 = arith.constant 0 : i32
    return %arg0, %c0_i32 : i32, i32
  }
  func.func @transform_1(%arg0: i32) -> (i32, i32) {
    %c0_i32 = arith.constant 0 : i32
    %c0_i32_0 = arith.constant 0 : i32
    return %arg0, %c0_i32 : i32, i32
  }
}

</mosaic_0001>

<llo_original>
// kernel: tpu_custom_call.1
$region0: #{tpu_custom_call.1}
  #allocation0 [shape = 'u32[]', space=smem, size = 0x4, offset = 0x4, fixed_abs, tag = 'smem constant byte address 0x4 - core index']
  #allocation1 [shape = 'u32[72,128]{1,0:T(1,128)}', space=vmem, size = 0x9000, scoped, tag = 'internal scratch']
  %s0 = inlined_call_operand.hbm [shape: f32[2,1024], index: 0, kind: input, shape index: {}]
  %s1 = inlined_call_operand.hbm [shape: f32[2,1024], index: 1, kind: output, shape index: {}]
  %s2 = sld [smem:[#allocation0]]
  $region18: #{tpu_custom_call.1} parent=0
    _
  %s4 = ssub.s32 1, %s2
  %s5 = scalar_select 0, %s4, %s2
  $region1: #{tpu_custom_call.1} parent=0
    #allocation2 [shape = 'u8[8192]{0}', space=vmem, size = 0x2000, scoped, tag = 'input window, operand 0, single buffered']
    #allocation3 [shape = 's32[1]{0}', space=sflag, size = 0x4, scoped, tag = 'scoped memory for tpu_custom_call.1']
    #allocation4 [shape = 's32[1]{0}', space=sflag, size = 0x4, scoped, tag = 'scoped memory for tpu_custom_call.1']
    #allocation5 [shape = 'u8[8192]{0}', space=vmem, size = 0x2000, scoped, tag = 'output window, operand 0, single buffered']
    %6 = vsyncpa [#allocation3], 0
    %7 = vsyncpa [#allocation4], 0
    // Predicated region
    $region2: #{tpu_custom_call.1} parent=1 // pred_check
      _
    $region3: #{tpu_custom_call.1} parent=1 // pred_check_branch
      %9 = sbr.rel (0) target = $region5
    $region4: #{tpu_custom_call.1} parent=1 // pred_region
      %11 = vsyncadd [#allocation3], 0
      %s13 = sshll.u32 %s0, 4
      %s14 = int_to_ptr.hbm [resolvable:$true] %s13
      %s15 = sshll.u32 [#allocation2], 4
      %s16 = int_to_ptr.vmem [resolvable:$true] %s15
      %18 = dma.hbm_to_vmem [thread:$0]  %s14, 256, %s16, [#allocation3]
    $region5: #{tpu_custom_call.1} parent=1 // pred_fallthru
      _
    // Predicated region
    $region6: #{tpu_custom_call.1} parent=1 // pred_check
      _
    $region7: #{tpu_custom_call.1} parent=1 // pred_check_branch
      %20 = sbr.rel (0) target = $region9
    $region8: #{tpu_custom_call.1} parent=1 // pred_region
      %22 = dma.done [#allocation3], 256
    $region9: #{tpu_custom_call.1} parent=1 // pred_fallthru
      _
    %v23 = vld [vmem:[#allocation2] sm:$0xff]
    %v24 = vld [vmem:[#allocation2 + $0x8] sm:$0xff]
    %v25 = vmax.f32 %v23, 0.0
    %v26 = vmax.f32 %v24, 0.0
    %v27 = vmul.f32 %v25, %v25
    %v28 = vmul.f32 %v26, %v26
    %29 = vst [vmem:[#allocation5] sm:$0xff] %v27
    %30 = vst [vmem:[#allocation5 + $0x8] sm:$0xff] %v28
    // Predicated region
    $region10: #{tpu_custom_call.1} parent=1 // pred_check
      _
    $region11: #{tpu_custom_call.1} parent=1 // pred_check_branch
      %32 = sbr.rel (0) target = $region13
    $region12: #{tpu_custom_call.1} parent=1 // pred_region
      %34 = vsyncadd [#allocation4], 0
      %s36 = sshll.u32 [#allocation5], 4
      %s37 = int_to_ptr.vmem [resolvable:$true] %s36
      %s38 = sshll.u32 %s1, 4
      %s39 = int_to_ptr.hbm [resolvable:$true] %s38
      %41 = dma.vmem_to_hbm [thread:$0]  %s37, 256, %s39, [#allocation4]
    $region13: #{tpu_custom_call.1} parent=1 // pred_fallthru
      _
    // Predicated region
    $region14: #{tpu_custom_call.1} parent=1 // pred_check
      _
    $region15: #{tpu_custom_call.1} parent=1 // pred_check_branch
      %43 = sbr.rel (0) target = $region17
    $region16: #{tpu_custom_call.1} parent=1 // pred_region
      %45 = dma.done [#allocation4], 256
    $region17: #{tpu_custom_call.1} parent=1 // pred_fallthru
      _
    %46 = vsyncpa [#allocation3], 1
    %47 = vsyncpa [#allocation4], 1

</llo_original>
